<compile_context>
chip_gen: v6e
topology: v6e:2x2x1
jax: 0.10.0
libtpu: 0.0.40
codegen_flags: <defaults>
</compile_context>

<pallas_src>
import jax
import jax.numpy as jnp
from jax import lax
from jax.experimental import pallas as pl
from jax.experimental.pallas import tpu as pltpu


def rnn_classifier_kernel(tok_ref, emb_ref, wih_ref, whh_ref, brnn_ref,
                          wcls_ref, bcls_ref, out_ref):
    B, T = tok_ref.shape
    V, D = emb_ref.shape            # V already padded to a sublane multiple
    H = whh_ref.shape[0]

    # ---- Fused embedding lookup: one-hot @ table on the MXU -----------------
    # onehot[b*T + t, v] = (tokens[b, t] == v); the embedding rows are then
    # gathered by a single (B*T, V) @ (V, D) vmatmul.  Row 0 of the table is
    # zero, matching nn.Embedding(padding_idx=0).
    tok = tok_ref[...]                                               # (B, T) int32
    iota_v = lax.broadcasted_iota(jnp.int32, (B, T, V), 2)
    onehot = jnp.where(tok[:, :, None] == iota_v, 1.0, 0.0)          # (B, T, V) f32
    x = jnp.dot(onehot.reshape(B * T, V), emb_ref[...],
                preferred_element_type=jnp.float32)                  # (B*T, D)

    # ---- Hoisted input projection for ALL timesteps (+ pre-summed bias) -----
    pre = jnp.dot(x, wih_ref[...],
                  preferred_element_type=jnp.float32) + brnn_ref[...]  # (B*T, H)
    pre = pre.reshape(B, T, H)       # ~8 KiB: kept in vregs, no VMEM scratch

    # ---- Serial recurrence (PyTorch nn.RNN, tanh): h_t = tanh(pre_t + h W_hh^T)
    # W_hh arrives pre-transposed (so plain h @ w_hh here); h_0 = 0.
    # T=8 -> fully unrolled static loop; each step is one small padded
    # (B,H)@(H,H) MXU dot + EUP tanh on the critical path.
    w_hh = whh_ref[...]
    h = jnp.zeros((B, H), jnp.float32)
    for t in range(T):
        h = jnp.tanh(pre[:, t, :] +
                     jnp.dot(h, w_hh, preferred_element_type=jnp.float32))

    # ---- Classifier + exact softmax on the last hidden state ----------------
    logits = jnp.dot(h, wcls_ref[...],
                     preferred_element_type=jnp.float32) + bcls_ref[...]  # (B, C)
    m = jnp.max(logits, axis=-1, keepdims=True)
    e = jnp.exp(logits - m)
    out_ref[...] = e / jnp.sum(e, axis=-1, keepdims=True)
    # NOTE: out is (B, C=8) -> a single masked-store tile; padding it to 128
    # lanes would require a wrapper-side slice that costs more than it saves.


@jax.jit
def torch_model_forward(x_tokens, params):
    """Equivalent of TorchModel.forward(x, y=None): one pallas_call, everything in VMEM."""
    B, T = x_tokens.shape
    C = params["w_cls"].shape[1]
    vmem = pl.BlockSpec(memory_space=pltpu.MemorySpace.VMEM)
    return pl.pallas_call(
        rnn_classifier_kernel,
        out_shape=jax.ShapeDtypeStruct((B, C), jnp.float32),
        in_specs=[vmem] * 7,
        out_specs=vmem,
    )(x_tokens, params["embedding"], params["w_ih"], params["w_hh"],
      params["b_rnn"], params["w_cls"], params["b_cls"])


def pack_params(embedding, w_ih, w_hh, b_ih, b_hh, w_cls, b_cls):
    """One-time prep from PyTorch layouts to the kernel layout (NOT in the forward path).

    PyTorch conventions expected:
      embedding (V, D), w_ih (H, D), w_hh (H, H), b_ih (H,), b_hh (H,),
      w_cls (C, H), b_cls (C,).
    """
    embedding = jnp.asarray(embedding, jnp.float32)
    V, D = embedding.shape
    v_pad = ((V + 7) // 8) * 8                     # pad vocab to sublane multiple
    emb = jnp.zeros((v_pad, D), jnp.float32).at[:V].set(embedding)
    return dict(
        embedding=emb,                                                    # (V_pad, D)
        w_ih=jnp.asarray(w_ih, jnp.float32).T,                            # (D, H)
        w_hh=jnp.asarray(w_hh, jnp.float32).T,                            # (H, H)
        b_rnn=(jnp.asarray(b_ih, jnp.float32)
               + jnp.asarray(b_hh, jnp.float32)).reshape(1, -1),          # (1, H)
        w_cls=jnp.asarray(w_cls, jnp.float32).T,                          # (H, C)
        b_cls=jnp.asarray(b_cls, jnp.float32).reshape(1, -1),             # (1, C)
    )


def init_torch_layout_params(key, vocab_size, vector_len, hidden, text_len):
    """Random params in PyTorch's native layouts (what a state_dict would hold)."""
    ks = jax.random.split(key, 7)
    emb = jax.random.normal(ks[0], (vocab_size, vector_len), jnp.float32) * 0.1
    emb = emb.at[0].set(0.0)                       # nn.Embedding(padding_idx=0)
    return dict(
        embedding=emb,
        w_ih=jax.random.normal(ks[1], (hidden, vector_len), jnp.float32) * 0.1,
        w_hh=jax.random.normal(ks[2], (hidden, hidden), jnp.float32) * 0.1,
        b_ih=jax.random.normal(ks[3], (hidden,), jnp.float32) * 0.1,
        b_hh=jax.random.normal(ks[4], (hidden,), jnp.float32) * 0.1,
        w_cls=jax.random.normal(ks[5], (text_len, hidden), jnp.float32) * 0.1,
        b_cls=jax.random.normal(ks[6], (text_len,), jnp.float32) * 0.1,
    )


def _reference(x_tokens, tp):
    """Pure-JAX reference using the PyTorch-layout params (validates pack_params too)."""
    emb = jnp.take(tp["embedding"], x_tokens, axis=0)        # (B, T, D)
    B, T, _ = emb.shape
    H = tp["w_hh"].shape[0]
    h = jnp.zeros((B, H), jnp.float32)
    for t in range(T):
        h = jnp.tanh(emb[:, t, :] @ tp["w_ih"].T + tp["b_ih"]
                     + h @ tp["w_hh"].T + tp["b_hh"])
    logits = h @ tp["w_cls"].T + tp["b_cls"]
    return jax.nn.softmax(logits, axis=-1)


if __name__ == "__main__":
    # Shapes consistent with the module: vocab=30, vector_len=16, hidden=32
    # (fixed by nn.RNN(vector_len, 32)), text_len (= #classes) = 8, seq=8, batch=8.
    VOCAB, VECTOR_LEN, TEXT_LEN, SEQ, HIDDEN, BATCH = 30, 16, 8, 8, 32, 8

    key = jax.random.PRNGKey(0)
    k_par, k_x = jax.random.split(key)
    torch_params = init_torch_layout_params(k_par, VOCAB, VECTOR_LEN, HIDDEN, TEXT_LEN)
    params = pack_params(**torch_params)           # one-time weight prep
    x_tokens = jax.random.randint(k_x, (BATCH, SEQ), 0, VOCAB, dtype=jnp.int32)

    probs = jax.block_until_ready(torch_model_forward(x_tokens, params))

    ref = _reference(x_tokens, torch_params)
    assert probs.shape == (BATCH, TEXT_LEN)
    # Exact softmax normalization -> rows sum to 1 to f32 precision.
    assert jnp.allclose(jnp.sum(probs, axis=-1), 1.0, atol=1e-5)
    # Residual difference vs. the XLA reference is MXU-pass rounding only.
    assert jnp.allclose(probs, ref, atol=1e-3, rtol=1e-3)
    # TODO(synk): the y != None branch (nn.CrossEntropyLoss) is not implemented;
    # only the inference path (softmax output) is reproduced.
    print("KERNEL_OK")
</pallas_src>

<mosaic_0001>
module attributes {stable_mosaic.version = 11 : i64} {
  func.func @rnn_classifier_kernel(%arg0: memref<8x8xi32, #tpu.memory_space<vmem>>, %arg1: memref<32x16xf32, #tpu.memory_space<vmem>>, %arg2: memref<16x32xf32, #tpu.memory_space<vmem>>, %arg3: memref<32x32xf32, #tpu.memory_space<vmem>>, %arg4: memref<1x32xf32, #tpu.memory_space<vmem>>, %arg5: memref<32x8xf32, #tpu.memory_space<vmem>>, %arg6: memref<1x8xf32, #tpu.memory_space<vmem>>, %arg7: memref<8x8xf32, #tpu.memory_space<vmem>>) attributes {dimension_semantics = [], scalar_prefetch = 0 : i64, scratch_operands = 0 : i64, tpu.core_type = #tpu.core_type<tc>} {
    %c0 = arith.constant 0 : index
    %c0_0 = arith.constant 0 : index
    %0 = vector.load %arg0[%c0, %c0_0] : memref<8x8xi32, #tpu.memory_space<vmem>>, vector<8x8xi32>
    %1 = tpu.iota {dimensions = array<i32: 2>} : vector<8x8x32xi32>
    %2 = vector.shape_cast %0 : vector<8x8xi32> to vector<8x8x1xi32>
    %3 = vector.broadcast %2 : vector<8x8x1xi32> to vector<8x8x32xi32>
    %4 = arith.cmpi eq, %3, %1 : vector<8x8x32xi32>
    %cst = arith.constant 1.000000e+00 : f32
    %cst_1 = arith.constant 0.000000e+00 : f32
    %5 = vector.broadcast %cst : f32 to vector<8x8x32xf32>
    %6 = vector.broadcast %cst_1 : f32 to vector<8x8x32xf32>
    %7 = arith.select %4, %5, %6 : vector<8x8x32xi1>, vector<8x8x32xf32>
    %8 = vector.shape_cast %7 : vector<8x8x32xf32> to vector<64x32xf32>
    %c0_2 = arith.constant 0 : index
    %c0_3 = arith.constant 0 : index
    %9 = vector.load %arg1[%c0_2, %c0_3] : memref<32x16xf32, #tpu.memory_space<vmem>>, vector<32x16xf32>
    %cst_4 = arith.constant dense<0.000000e+00> : vector<64x16xf32>
    %10 = tpu.matmul %8, %9, %cst_4 {dimension_numbers = #tpu.dot_dimension_numbers<[1], [0], [0], [1], [0, 0, 1, 1], [], []>} : vector<64x32xf32>, vector<32x16xf32>, vector<64x16xf32> -> vector<64x16xf32>
    %c0_5 = arith.constant 0 : index
    %c0_6 = arith.constant 0 : index
    %11 = vector.load %arg2[%c0_5, %c0_6] : memref<16x32xf32, #tpu.memory_space<vmem>>, vector<16x32xf32>
    %cst_7 = arith.constant dense<0.000000e+00> : vector<64x32xf32>
    %12 = tpu.matmul %10, %11, %cst_7 {dimension_numbers = #tpu.dot_dimension_numbers<[1], [0], [0], [1], [0, 0, 1, 1], [], []>} : vector<64x16xf32>, vector<16x32xf32>, vector<64x32xf32> -> vector<64x32xf32>
    %c0_8 = arith.constant 0 : index
    %c0_9 = arith.constant 0 : index
    %13 = vector.load %arg4[%c0_8, %c0_9] : memref<1x32xf32, #tpu.memory_space<vmem>>, vector<1x32xf32>
    %14 = vector.broadcast %13 : vector<1x32xf32> to vector<64x32xf32>
    %15 = arith.addf %12, %14 : vector<64x32xf32>
    %16 = vector.shape_cast %15 : vector<64x32xf32> to vector<8x8x32xf32>
    %c0_10 = arith.constant 0 : index
    %c0_11 = arith.constant 0 : index
    %17 = vector.load %arg3[%c0_10, %c0_11] : memref<32x32xf32, #tpu.memory_space<vmem>>, vector<32x32xf32>
    %cst_12 = arith.constant 0.000000e+00 : f32
    %18 = vector.broadcast %cst_12 : f32 to vector<8x32xf32>
    %19 = vector.extract_strided_slice %16 {offsets = [0, 0, 0], sizes = [8, 1, 32], strides = [1, 1, 1]} : vector<8x8x32xf32> to vector<8x1x32xf32>
    %20 = vector.shape_cast %19 : vector<8x1x32xf32> to vector<8x32xf32>
    %cst_13 = arith.constant dense<0.000000e+00> : vector<8x32xf32>
    %21 = tpu.matmul %18, %17, %cst_13 {dimension_numbers = #tpu.dot_dimension_numbers<[1], [0], [0], [1], [0, 0, 1, 1], [], []>} : vector<8x32xf32>, vector<32x32xf32>, vector<8x32xf32> -> vector<8x32xf32>
    %22 = arith.addf %20, %21 : vector<8x32xf32>
    %23 = math.tanh %22 : vector<8x32xf32>
    %24 = vector.extract_strided_slice %16 {offsets = [0, 1, 0], sizes = [8, 1, 32], strides = [1, 1, 1]} : vector<8x8x32xf32> to vector<8x1x32xf32>
    %25 = vector.shape_cast %24 : vector<8x1x32xf32> to vector<8x32xf32>
    %cst_14 = arith.constant dense<0.000000e+00> : vector<8x32xf32>
    %26 = tpu.matmul %23, %17, %cst_14 {dimension_numbers = #tpu.dot_dimension_numbers<[1], [0], [0], [1], [0, 0, 1, 1], [], []>} : vector<8x32xf32>, vector<32x32xf32>, vector<8x32xf32> -> vector<8x32xf32>
    %27 = arith.addf %25, %26 : vector<8x32xf32>
    %28 = math.tanh %27 : vector<8x32xf32>
    %29 = vector.extract_strided_slice %16 {offsets = [0, 2, 0], sizes = [8, 1, 32], strides = [1, 1, 1]} : vector<8x8x32xf32> to vector<8x1x32xf32>
    %30 = vector.shape_cast %29 : vector<8x1x32xf32> to vector<8x32xf32>
    %cst_15 = arith.constant dense<0.000000e+00> : vector<8x32xf32>
    %31 = tpu.matmul %28, %17, %cst_15 {dimension_numbers = #tpu.dot_dimension_numbers<[1], [0], [0], [1], [0, 0, 1, 1], [], []>} : vector<8x32xf32>, vector<32x32xf32>, vector<8x32xf32> -> vector<8x32xf32>
    %32 = arith.addf %30, %31 : vector<8x32xf32>
    %33 = math.tanh %32 : vector<8x32xf32>
    %34 = vector.extract_strided_slice %16 {offsets = [0, 3, 0], sizes = [8, 1, 32], strides = [1, 1, 1]} : vector<8x8x32xf32> to vector<8x1x32xf32>
    %35 = vector.shape_cast %34 : vector<8x1x32xf32> to vector<8x32xf32>
    %cst_16 = arith.constant dense<0.000000e+00> : vector<8x32xf32>
    %36 = tpu.matmul %33, %17, %cst_16 {dimension_numbers = #tpu.dot_dimension_numbers<[1], [0], [0], [1], [0, 0, 1, 1], [], []>} : vector<8x32xf32>, vector<32x32xf32>, vector<8x32xf32> -> vector<8x32xf32>
    %37 = arith.addf %35, %36 : vector<8x32xf32>
    %38 = math.tanh %37 : vector<8x32xf32>
    %39 = vector.extract_strided_slice %16 {offsets = [0, 4, 0], sizes = [8, 1, 32], strides = [1, 1, 1]} : vector<8x8x32xf32> to vector<8x1x32xf32>
    %40 = vector.shape_cast %39 : vector<8x1x32xf32> to vector<8x32xf32>
    %cst_17 = arith.constant dense<0.000000e+00> : vector<8x32xf32>
    %41 = tpu.matmul %38, %17, %cst_17 {dimension_numbers = #tpu.dot_dimension_numbers<[1], [0], [0], [1], [0, 0, 1, 1], [], []>} : vector<8x32xf32>, vector<32x32xf32>, vector<8x32xf32> -> vector<8x32xf32>
    %42 = arith.addf %40, %41 : vector<8x32xf32>
    %43 = math.tanh %42 : vector<8x32xf32>
    %44 = vector.extract_strided_slice %16 {offsets = [0, 5, 0], sizes = [8, 1, 32], strides = [1, 1, 1]} : vector<8x8x32xf32> to vector<8x1x32xf32>
    %45 = vector.shape_cast %44 : vector<8x1x32xf32> to vector<8x32xf32>
    %cst_18 = arith.constant dense<0.000000e+00> : vector<8x32xf32>
    %46 = tpu.matmul %43, %17, %cst_18 {dimension_numbers = #tpu.dot_dimension_numbers<[1], [0], [0], [1], [0, 0, 1, 1], [], []>} : vector<8x32xf32>, vector<32x32xf32>, vector<8x32xf32> -> vector<8x32xf32>
    %47 = arith.addf %45, %46 : vector<8x32xf32>
    %48 = math.tanh %47 : vector<8x32xf32>
    %49 = vector.extract_strided_slice %16 {offsets = [0, 6, 0], sizes = [8, 1, 32], strides = [1, 1, 1]} : vector<8x8x32xf32> to vector<8x1x32xf32>
    %50 = vector.shape_cast %49 : vector<8x1x32xf32> to vector<8x32xf32>
    %cst_19 = arith.constant dense<0.000000e+00> : vector<8x32xf32>
    %51 = tpu.matmul %48, %17, %cst_19 {dimension_numbers = #tpu.dot_dimension_numbers<[1], [0], [0], [1], [0, 0, 1, 1], [], []>} : vector<8x32xf32>, vector<32x32xf32>, vector<8x32xf32> -> vector<8x32xf32>
    %52 = arith.addf %50, %51 : vector<8x32xf32>
    %53 = math.tanh %52 : vector<8x32xf32>
    %54 = vector.extract_strided_slice %16 {offsets = [0, 7, 0], sizes = [8, 1, 32], strides = [1, 1, 1]} : vector<8x8x32xf32> to vector<8x1x32xf32>
    %55 = vector.shape_cast %54 : vector<8x1x32xf32> to vector<8x32xf32>
    %cst_20 = arith.constant dense<0.000000e+00> : vector<8x32xf32>
    %56 = tpu.matmul %53, %17, %cst_20 {dimension_numbers = #tpu.dot_dimension_numbers<[1], [0], [0], [1], [0, 0, 1, 1], [], []>} : vector<8x32xf32>, vector<32x32xf32>, vector<8x32xf32> -> vector<8x32xf32>
    %57 = arith.addf %55, %56 : vector<8x32xf32>
    %58 = math.tanh %57 : vector<8x32xf32>
    %c0_21 = arith.constant 0 : index
    %c0_22 = arith.constant 0 : index
    %59 = vector.load %arg5[%c0_21, %c0_22] : memref<32x8xf32, #tpu.memory_space<vmem>>, vector<32x8xf32>
    %cst_23 = arith.constant dense<0.000000e+00> : vector<8x8xf32>
    %60 = tpu.matmul %58, %59, %cst_23 {dimension_numbers = #tpu.dot_dimension_numbers<[1], [0], [0], [1], [0, 0, 1, 1], [], []>} : vector<8x32xf32>, vector<32x8xf32>, vector<8x8xf32> -> vector<8x8xf32>
    %c0_24 = arith.constant 0 : index
    %c0_25 = arith.constant 0 : index
    %61 = vector.load %arg6[%c0_24, %c0_25] : memref<1x8xf32, #tpu.memory_space<vmem>>, vector<1x8xf32>
    %62 = vector.broadcast %61 : vector<1x8xf32> to vector<8x8xf32>
    %63 = arith.addf %60, %62 : vector<8x8xf32>
    %cst_26 = arith.constant dense<0xFF800000> : vector<8xf32>
    %64 = vector.multi_reduction <maximumf>, %63, %cst_26 [1] : vector<8x8xf32> to vector<8xf32>
    %65 = vector.shape_cast %64 : vector<8xf32> to vector<8x1xf32>
    %66 = vector.broadcast %65 : vector<8x1xf32> to vector<8x8xf32>
    %67 = arith.subf %63, %66 : vector<8x8xf32>
    %68 = math.exp %67 : vector<8x8xf32>
    %cst_27 = arith.constant dense<0.000000e+00> : vector<8xf32>
    %69 = vector.multi_reduction <add>, %68, %cst_27 [1] : vector<8x8xf32> to vector<8xf32>
    %70 = vector.shape_cast %69 : vector<8xf32> to vector<8x1xf32>
    %71 = vector.broadcast %70 : vector<8x1xf32> to vector<8x8xf32>
    %72 = arith.divf %68, %71 : vector<8x8xf32>
    %c0_28 = arith.constant 0 : index
    %c0_29 = arith.constant 0 : index
    %73 = vector.load %arg7[%c0_28, %c0_29] : memref<8x8xf32, #tpu.memory_space<vmem>>, vector<8x8xf32>
    tpu.vector_store %arg7[%c0_28, %c0_29], %72 {strides = array<i32>} : memref<8x8xf32, #tpu.memory_space<vmem>>, vector<8x8xf32>,
    return
  }
}

</mosaic_0001>

<llo_original>
// kernel: torch_model_forward.1
$region0: #{torch_model_forward.1}
  #allocation0 [shape = 'u32[]', space=smem, size = 0x4, offset = 0x4, fixed_abs, tag = 'smem constant byte address 0x4 - core index']
  #allocation1 [shape = 'u32[144,128]{1,0:T(1,128)}', space=vmem, size = 0x12000, scoped, tag = 'internal scratch']
  %s0 = inlined_call_operand.vmem [shape: s32[8,8], index: 0, kind: input, shape index: {}]
  %s1 = inlined_call_operand.vmem [shape: f32[32,16], index: 1, kind: input, shape index: {}]
  %s2 = inlined_call_operand.vmem [shape: f32[16,32], index: 2, kind: input, shape index: {}]
  %s3 = inlined_call_operand.vmem [shape: f32[32,32], index: 3, kind: input, shape index: {}]
  %s4 = inlined_call_operand.vmem [shape: f32[1,32], index: 4, kind: input, shape index: {}]
  %s5 = inlined_call_operand.vmem [shape: f32[32,8], index: 5, kind: input, shape index: {}]
  %s6 = inlined_call_operand.vmem [shape: f32[1,8], index: 6, kind: input, shape index: {}]
  %s7 = inlined_call_operand.hbm [shape: f32[8,8], index: 7, kind: output, shape index: {}]
  %s8 = sld [smem:[#allocation0]]
  $region38: #{torch_model_forward.1} parent=0
    _
  %s10 = ssub.s32 1, %s8
  %s11 = scalar_select 0, %s10, %s8
  $region1: #{torch_model_forward.1} parent=0
    #allocation2 [shape = 'u8[4096]{0}', space=vmem, size = 0x1000, scoped, tag = 'output window, operand 0, single buffered']
    #allocation3 [shape = 's32[1]{0}', space=sflag, size = 0x4, scoped, tag = 'scoped memory for torch_model_forward.1']
    %12 = vsyncpa [#allocation3], 0
    // Predicated region
    $region2: #{torch_model_forward.1} parent=1 // pred_check
      _
    $region3: #{torch_model_forward.1} parent=1 // pred_check_branch
      %14 = sbr.rel (0) target = $region5
    $region4: #{torch_model_forward.1} parent=1 // pred_region
      _
    $region5: #{torch_model_forward.1} parent=1 // pred_fallthru
      _
    // Predicated region
    $region6: #{torch_model_forward.1} parent=1 // pred_check
      _
    $region7: #{torch_model_forward.1} parent=1 // pred_check_branch
      %16 = sbr.rel (0) target = $region9
    $region8: #{torch_model_forward.1} parent=1 // pred_region
      _
    $region9: #{torch_model_forward.1} parent=1 // pred_fallthru
      _
    // Predicated region
    $region10: #{torch_model_forward.1} parent=1 // pred_check
      _
    $region11: #{torch_model_forward.1} parent=1 // pred_check_branch
      %18 = sbr.rel (0) target = $region13
    $region12: #{torch_model_forward.1} parent=1 // pred_region
      _
    $region13: #{torch_model_forward.1} parent=1 // pred_fallthru
      _
    // Predicated region
    $region14: #{torch_model_forward.1} parent=1 // pred_check
      _
    $region15: #{torch_model_forward.1} parent=1 // pred_check_branch
      %20 = sbr.rel (0) target = $region17
    $region16: #{torch_model_forward.1} parent=1 // pred_region
      _
    $region17: #{torch_model_forward.1} parent=1 // pred_fallthru
      _
    // Predicated region
    $region18: #{torch_model_forward.1} parent=1 // pred_check
      _
    $region19: #{torch_model_forward.1} parent=1 // pred_check_branch
      %22 = sbr.rel (0) target = $region21
    $region20: #{torch_model_forward.1} parent=1 // pred_region
      _
    $region21: #{torch_model_forward.1} parent=1 // pred_fallthru
      _
    // Predicated region
    $region22: #{torch_model_forward.1} parent=1 // pred_check
      _
    $region23: #{torch_model_forward.1} parent=1 // pred_check_branch
      %24 = sbr.rel (0) target = $region25
    $region24: #{torch_model_forward.1} parent=1 // pred_region
      _
    $region25: #{torch_model_forward.1} parent=1 // pred_fallthru
      _
    // Predicated region
    $region26: #{torch_model_forward.1} parent=1 // pred_check
      _
    $region27: #{torch_model_forward.1} parent=1 // pred_check_branch
      %26 = sbr.rel (0) target = $region29
    $region28: #{torch_model_forward.1} parent=1 // pred_region
      _
    $region29: #{torch_model_forward.1} parent=1 // pred_fallthru
      _
    %v27 = vld [vmem:[%s0] sm:$0xff]
    %v28 = vlaneseq
    %v29 = vand.u32 %v28, 127
    %v30 = vlaneseq
    %v31 = vshrl.u32 %v30, 7
    %v32 = vsub.s32 0, %v31
    %v33 = vrot.slane %v27, %v32
    %35 = vbcast.lane.b32.xlu0 %v33, 256
    %v36 = vpop.permute.xlu0 %35
    %v37 = vlaneseq
    %v38 = vshrl.u32 %v37, 7
    %v39 = vsub.s32 1, %v38
    %v40 = vrot.slane %v27, %v39
    %42 = vbcast.lane.b32.xlu0 %v40, 256
    %v43 = vpop.permute.xlu0 %42
    %v44 = vlaneseq
    %v45 = vshrl.u32 %v44, 7
    %v46 = vsub.s32 2, %v45
    %v47 = vrot.slane %v27, %v46
    %49 = vbcast.lane.b32.xlu0 %v47, 256
    %v50 = vpop.permute.xlu0 %49
    %v51 = vlaneseq
    %v52 = vshrl.u32 %v51, 7
    %v53 = vsub.s32 3, %v52
    %v54 = vrot.slane %v27, %v53
    %56 = vbcast.lane.b32.xlu0 %v54, 256
    %v57 = vpop.permute.xlu0 %56
    %v58 = vlaneseq
    %v59 = vshrl.u32 %v58, 7
    %v60 = vsub.s32 4, %v59
    %v61 = vrot.slane %v27, %v60
    %63 = vbcast.lane.b32.xlu0 %v61, 256
    %v64 = vpop.permute.xlu0 %63
    %v65 = vlaneseq
    %v66 = vshrl.u32 %v65, 7
    %v67 = vsub.s32 5, %v66
    %v68 = vrot.slane %v27, %v67
    %70 = vbcast.lane.b32.xlu0 %v68, 256
    %v71 = vpop.permute.xlu0 %70
    %v72 = vlaneseq
    %v73 = vshrl.u32 %v72, 7
    %v74 = vsub.s32 6, %v73
    %v75 = vrot.slane %v27, %v74
    %77 = vbcast.lane.b32.xlu0 %v75, 256
    %v78 = vpop.permute.xlu0 %77
    %v79 = vlaneseq
    %v80 = vshrl.u32 %v79, 7
    %v81 = vsub.s32 7, %v80
    %v82 = vrot.slane %v27, %v81
    %84 = vbcast.lane.b32.xlu0 %v82, 256
    %v85 = vpop.permute.xlu0 %84
    %vm86 = vcmp.eq.s32.totalorder %v36, %v29
    %vm87 = vcmp.eq.s32.totalorder %v43, %v29
    %vm88 = vcmp.eq.s32.totalorder %v50, %v29
    %vm89 = vcmp.eq.s32.totalorder %v57, %v29
    %vm90 = vcmp.eq.s32.totalorder %v64, %v29
    %vm91 = vcmp.eq.s32.totalorder %v71, %v29
    %vm92 = vcmp.eq.s32.totalorder %v78, %v29
    %vm93 = vcmp.eq.s32.totalorder %v85, %v29
    %v94 = vsel %vm86, 1.0, 0.0
    %v95 = vsel %vm87, 1.0, 0.0
    %v96 = vsel %vm88, 1.0, 0.0
    %v97 = vsel %vm89, 1.0, 0.0
    %v98 = vsel %vm90, 1.0, 0.0
    %v99 = vsel %vm91, 1.0, 0.0
    %v100 = vsel %vm92, 1.0, 0.0
    %v101 = vsel %vm93, 1.0, 0.0
    %v102 = vld [vmem:[%s1] sm:$0xff]
    %v103 = vld [vmem:[%s1 + $0x8] sm:$0xff]
    %v104 = vld [vmem:[%s1 + $0x10] sm:$0xff]
    %v105 = vld [vmem:[%s1 + $0x18] sm:$0xff]
    %vm106 = vcmask 261120
    %v108 = vsel %vm106, %v94, 0
    %v111 = vsel %vm106, %v95, 0
    %v114 = vsel %vm106, %v96, 0
    %v117 = vsel %vm106, %v97, 0
    %v120 = vsel %vm106, %v98, 0
    %v123 = vsel %vm106, %v99, 0
    %v126 = vsel %vm106, %v100, 0
    %v129 = vsel %vm106, %v101, 0
    %131 = vmatprep.subr.mxu0 0.0
    %132 = vmatpush1.msra.mxu0 0.0
    %133 = vmatprep.subr.mxu0 0.0
    %134 = vmatpush1.msra.mxu0 0.0
    %135 = vmatprep.subr.mxu0 0.0
    %136 = vmatpush1.msra.mxu0 0.0
    %137 = vmatprep.subr.mxu0 0.0
    %138 = vmatpush1.msra.mxu0 0.0
    %139 = vmatprep.subr.mxu0 0.0
    %140 = vmatpush1.msra.mxu0 0.0
    %141 = vmatprep.subr.mxu0 0.0
    %142 = vmatpush1.msra.mxu0 0.0
    %143 = vmatprep.subr.mxu0 0.0
    %144 = vmatpush1.msra.mxu0 0.0
    %145 = vmatprep.subr.mxu0 0.0
    %146 = vmatpush1.msra.mxu0 0.0
    %147 = vmatprep.subr.mxu0 0.0
    %148 = vmatpush1.msra.mxu0 0.0
    %149 = vmatprep.subr.mxu0 0.0
    %150 = vmatpush1.msra.mxu0 0.0
    %151 = vmatprep.subr.mxu0 0.0
    %152 = vmatpush1.msra.mxu0 0.0
    %153 = vmatprep.subr.mxu0 0.0
    %154 = vmatpush1.msra.mxu0 0.0
    %155 = vmatprep.subr.mxu0 0.0
    %156 = vmatpush1.msra.mxu0 %v105
    %157 = vmatprep.subr.mxu0 0.0
    %158 = vmatpush1.msra.mxu0 %v104
    %159 = vmatprep.subr.mxu0 0.0
    %160 = vmatpush1.msra.mxu0 %v103
    %161 = vmatprep.subr.mxu0 0.0
    %162 = vmatpush1.msra.mxu0 %v102
    %163 = vmatprep.subr.mxu0 0.0
    %164 = vmatpush2.msra.mxu0 0.0
    %165 = vmatprep.subr.mxu0 0.0
    %166 = vmatpush2.msra.mxu0 0.0
    %167 = vmatprep.subr.mxu0 0.0
    %168 = vmatpush2.msra.mxu0 0.0
    %169 = vmatprep.subr.mxu0 0.0
    %170 = vmatpush2.msra.mxu0 0.0
    %171 = vmatprep.subr.mxu0 0.0
    %172 = vmatpush2.msra.mxu0 0.0
    %173 = vmatprep.subr.mxu0 0.0
    %174 = vmatpush2.msra.mxu0 0.0
    %175 = vmatprep.subr.mxu0 0.0
    %176 = vmatpush2.msra.mxu0 0.0
    %177 = vmatprep.subr.mxu0 0.0
    %178 = vmatpush2.msra.mxu0 0.0
    %179 = vmatprep.subr.mxu0 0.0
    %180 = vmatpush2.msra.mxu0 0.0
    %181 = vmatprep.subr.mxu0 0.0
    %182 = vmatpush2.msra.mxu0 0.0
    %183 = vmatprep.subr.mxu0 0.0
    %184 = vmatpush2.msra.mxu0 0.0
    %185 = vmatprep.subr.mxu0 0.0
    %186 = vmatpush2.msra.mxu0 0.0
    %187 = vmatprep.subr.mxu0 0.0
    %188 = vmatpush2.msra.mxu0 0.0
    %189 = vmatprep.subr.mxu0 0.0
    %190 = vmatpush2.msra.mxu0 0.0
    %191 = vmatprep.subr.mxu0 0.0
    %192 = vmatpush2.msra.mxu0 0.0
    %193 = vmatprep.subr.mxu0 0.0
    %194 = vmatpush2.msra.mxu0 0.0
    %195 = vmatprep.mubr.f32.mxu0 0.0
    %196 = vmatmul.mubr.f32.gmra.mxu0 %v108
    %v197 = vpop.f32.mrf.mxu0
    %v198 = vadd.f32 0.0, %v197
    %v199 = vpop.f32.mrf.mxu0
    %200 = vmatprep.mubr.f32.mxu0 0.0
    %201 = vmatmul.mubr.f32.gmra.mxu0 %v111
    %v202 = vpop.f32.mrf.mxu0
    %v203 = vadd.f32 0.0, %v202
    %v204 = vpop.f32.mrf.mxu0
    %205 = vmatprep.mubr.f32.mxu0 0.0
    %206 = vmatmul.mubr.f32.gmra.mxu0 %v114
    %v207 = vpop.f32.mrf.mxu0
    %v208 = vadd.f32 0.0, %v207
    %v209 = vpop.f32.mrf.mxu0
    %210 = vmatprep.mubr.f32.mxu0 0.0
    %211 = vmatmul.mubr.f32.gmra.mxu0 %v117
    %v212 = vpop.f32.mrf.mxu0
    %v213 = vadd.f32 0.0, %v212
    %v214 = vpop.f32.mrf.mxu0
    %215 = vmatprep.mubr.f32.mxu0 0.0
    %216 = vmatmul.mubr.f32.gmra.mxu0 %v120
    %v217 = vpop.f32.mrf.mxu0
    %v218 = vadd.f32 0.0, %v217
    %v219 = vpop.f32.mrf.mxu0
    %220 = vmatprep.mubr.f32.mxu0 0.0
    %221 = vmatmul.mubr.f32.gmra.mxu0 %v123
    %v222 = vpop.f32.mrf.mxu0
    %v223 = vadd.f32 0.0, %v222
    %v224 = vpop.f32.mrf.mxu0
    %225 = vmatprep.mubr.f32.mxu0 0.0
    %226 = vmatmul.mubr.f32.gmra.mxu0 %v126
    %v227 = vpop.f32.mrf.mxu0
    %v228 = vadd.f32 0.0, %v227
    %v229 = vpop.f32.mrf.mxu0
    %230 = vmatprep.mubr.f32.mxu0 0.0
    %231 = vmatmul.mubr.f32.gmra.mxu0 %v129
    %v232 = vpop.f32.mrf.mxu0
    %v233 = vadd.f32 0.0, %v232
    %v234 = vpop.f32.mrf.mxu0
    %235 = vdwg.mxu0
    %v236 = vld [vmem:[%s2] sm:$0xff]
    %v237 = vld [vmem:[%s2 + $0x8] sm:$0xff]
    %v238 = vld [vmem:[%s4] sm:$0x1]
    %v240 = vlaneseq
    %v241 = vshrl.u32 %v240, 7
    %v242 = vsub.s32 0, %v241
    %v243 = vrot.slane %v238, %v242
    %vm245 = vcmask 130048
    %v247 = vsel %vm245, %v198, 0
    %v250 = vsel %vm245, %v203, 0
    %v253 = vsel %vm245, %v208, 0
    %v256 = vsel %vm245, %v213, 0
    %v259 = vsel %vm245, %v218, 0
    %v262 = vsel %vm245, %v223, 0
    %v265 = vsel %vm245, %v228, 0
    %v268 = vsel %vm245, %v233, 0
    %270 = vmatprep.subr.mxu0 0.0
    %271 = vmatpush1.msra.mxu0 0.0
    %272 = vmatprep.subr.mxu0 0.0
    %273 = vmatpush1.msra.mxu0 0.0
    %274 = vmatprep.subr.mxu0 0.0
    %275 = vmatpush1.msra.mxu0 0.0
    %276 = vmatprep.subr.mxu0 0.0
    %277 = vmatpush1.msra.mxu0 0.0
    %278 = vmatprep.subr.mxu0 0.0
    %279 = vmatpush1.msra.mxu0 0.0
    %280 = vmatprep.subr.mxu0 0.0
    %281 = vmatpush1.msra.mxu0 0.0
    %282 = vmatprep.subr.mxu0 0.0
    %283 = vmatpush1.msra.mxu0 0.0
    %284 = vmatprep.subr.mxu0 0.0
    %285 = vmatpush1.msra.mxu0 0.0
    %286 = vmatprep.subr.mxu0 0.0
    %287 = vmatpush1.msra.mxu0 0.0
    %288 = vmatprep.subr.mxu0 0.0
    %289 = vmatpush1.msra.mxu0 0.0
    %290 = vmatprep.subr.mxu0 0.0
    %291 = vmatpush1.msra.mxu0 0.0
    %292 = vmatprep.subr.mxu0 0.0
    %293 = vmatpush1.msra.mxu0 0.0
    %294 = vmatprep.subr.mxu0 0.0
    %295 = vmatpush1.msra.mxu0 0.0
    %296 = vmatprep.subr.mxu0 0.0
    %297 = vmatpush1.msra.mxu0 0.0
    %298 = vmatprep.subr.mxu0 0.0
    %299 = vmatpush1.msra.mxu0 %v237
    %300 = vmatprep.subr.mxu0 0.0
    %301 = vmatpush1.msra.mxu0 %v236
    %302 = vmatprep.subr.mxu0 0.0
    %303 = vmatpush2.msra.mxu0 0.0
    %304 = vmatprep.subr.mxu0 0.0
    %305 = vmatpush2.msra.mxu0 0.0
    %306 = vmatprep.subr.mxu0 0.0
    %307 = vmatpush2.msra.mxu0 0.0
    %308 = vmatprep.subr.mxu0 0.0
    %309 = vmatpush2.msra.mxu0 0.0
    %310 = vmatprep.subr.mxu0 0.0
    %311 = vmatpush2.msra.mxu0 0.0
    %312 = vmatprep.subr.mxu0 0.0
    %313 = vmatpush2.msra.mxu0 0.0
    %314 = vmatprep.subr.mxu0 0.0
    %315 = vmatpush2.msra.mxu0 0.0
    %316 = vmatprep.subr.mxu0 0.0
    %317 = vmatpush2.msra.mxu0 0.0
    %318 = vmatprep.subr.mxu0 0.0
    %319 = vmatpush2.msra.mxu0 0.0
    %320 = vmatprep.subr.mxu0 0.0
    %321 = vmatpush2.msra.mxu0 0.0
    %322 = vmatprep.subr.mxu0 0.0
    %323 = vmatpush2.msra.mxu0 0.0
    %324 = vmatprep.subr.mxu0 0.0
    %325 = vmatpush2.msra.mxu0 0.0
    %326 = vmatprep.subr.mxu0 0.0
    %327 = vmatpush2.msra.mxu0 0.0
    %328 = vmatprep.subr.mxu0 0.0
    %329 = vmatpush2.msra.mxu0 0.0
    %330 = vmatprep.subr.mxu0 0.0
    %331 = vmatpush2.msra.mxu0 0.0
    %332 = vmatprep.subr.mxu0 0.0
    %333 = vmatpush2.msra.mxu0 0.0
    %334 = vmatprep.mubr.f32.mxu0 0.0
    %335 = vmatmul.mubr.f32.gmra.mxu0 %v247
    %v336 = vpop.f32.mrf.mxu0
    %v337 = vadd.f32 %v243, %v336
    %v338 = vpop.f32.mrf.mxu0
    %339 = vmatprep.mubr.f32.mxu0 0.0
    %340 = vmatmul.mubr.f32.gmra.mxu0 %v250
    %v341 = vpop.f32.mrf.mxu0
    %v342 = vadd.f32 %v243, %v341
    %v343 = vpop.f32.mrf.mxu0
    %344 = vmatprep.mubr.f32.mxu0 0.0
    %345 = vmatmul.mubr.f32.gmra.mxu0 %v253
    %v346 = vpop.f32.mrf.mxu0
    %v347 = vadd.f32 %v243, %v346
    %v348 = vpop.f32.mrf.mxu0
    %349 = vmatprep.mubr.f32.mxu0 0.0
    %350 = vmatmul.mubr.f32.gmra.mxu0 %v256
    %v351 = vpop.f32.mrf.mxu0
    %v352 = vadd.f32 %v243, %v351
    %v353 = vpop.f32.mrf.mxu0
    %354 = vmatprep.mubr.f32.mxu0 0.0
    %355 = vmatmul.mubr.f32.gmra.mxu0 %v259
    %v356 = vpop.f32.mrf.mxu0
    %v357 = vadd.f32 %v243, %v356
    %v358 = vpop.f32.mrf.mxu0
    %359 = vmatprep.mubr.f32.mxu0 0.0
    %360 = vmatmul.mubr.f32.gmra.mxu0 %v262
    %v361 = vpop.f32.mrf.mxu0
    %v362 = vadd.f32 %v243, %v361
    %v363 = vpop.f32.mrf.mxu0
    %364 = vmatprep.mubr.f32.mxu0 0.0
    %365 = vmatmul.mubr.f32.gmra.mxu0 %v265
    %v366 = vpop.f32.mrf.mxu0
    %v367 = vadd.f32 %v243, %v366
    %v368 = vpop.f32.mrf.mxu0
    %369 = vmatprep.mubr.f32.mxu0 0.0
    %370 = vmatmul.mubr.f32.gmra.mxu0 %v268
    %v371 = vpop.f32.mrf.mxu0
    %v372 = vadd.f32 %v243, %v371
    %v373 = vpop.f32.mrf.mxu0
    %374 = vdwg.mxu0
    %v375 = vld [vmem:[%s3] sm:$0xff]
    %v376 = vld [vmem:[%s3 + $0x8] sm:$0xff]
    %v377 = vld [vmem:[%s3 + $0x10] sm:$0xff]
    %v378 = vld [vmem:[%s3 + $0x18] sm:$0xff]
    %v380 = vsel %vm106, 0.0, 0
    %382 = vmatprep.subr.mxu0 0.0
    %383 = vmatpush1.msra.mxu0 0.0
    %384 = vmatprep.subr.mxu0 0.0
    %385 = vmatpush1.msra.mxu0 0.0
    %386 = vmatprep.subr.mxu0 0.0
    %387 = vmatpush1.msra.mxu0 0.0
    %388 = vmatprep.subr.mxu0 0.0
    %389 = vmatpush1.msra.mxu0 0.0
    %390 = vmatprep.subr.mxu0 0.0
    %391 = vmatpush1.msra.mxu0 0.0
    %392 = vmatprep.subr.mxu0 0.0
    %393 = vmatpush1.msra.mxu0 0.0
    %394 = vmatprep.subr.mxu0 0.0
    %395 = vmatpush1.msra.mxu0 0.0
    %396 = vmatprep.subr.mxu0 0.0
    %397 = vmatpush1.msra.mxu0 0.0
    %398 = vmatprep.subr.mxu0 0.0
    %399 = vmatpush1.msra.mxu0 0.0
    %400 = vmatprep.subr.mxu0 0.0
    %401 = vmatpush1.msra.mxu0 0.0
    %402 = vmatprep.subr.mxu0 0.0
    %403 = vmatpush1.msra.mxu0 0.0
    %404 = vmatprep.subr.mxu0 0.0
    %405 = vmatpush1.msra.mxu0 0.0
    %406 = vmatprep.subr.mxu0 0.0
    %407 = vmatpush1.msra.mxu0 %v378
    %408 = vmatprep.subr.mxu0 0.0
    %409 = vmatpush1.msra.mxu0 %v377
    %410 = vmatprep.subr.mxu0 0.0
    %411 = vmatpush1.msra.mxu0 %v376
    %412 = vmatprep.subr.mxu0 0.0
    %413 = vmatpush1.msra.mxu0 %v375
    %414 = vmatprep.subr.mxu0 0.0
    %415 = vmatpush2.msra.mxu0 0.0
    %416 = vmatprep.subr.mxu0 0.0
    %417 = vmatpush2.msra.mxu0 0.0
    %418 = vmatprep.subr.mxu0 0.0
    %419 = vmatpush2.msra.mxu0 0.0
    %420 = vmatprep.subr.mxu0 0.0
    %421 = vmatpush2.msra.mxu0 0.0
    %422 = vmatprep.subr.mxu0 0.0
    %423 = vmatpush2.msra.mxu0 0.0
    %424 = vmatprep.subr.mxu0 0.0
    %425 = vmatpush2.msra.mxu0 0.0
    %426 = vmatprep.subr.mxu0 0.0
    %427 = vmatpush2.msra.mxu0 0.0
    %428 = vmatprep.subr.mxu0 0.0
    %429 = vmatpush2.msra.mxu0 0.0
    %430 = vmatprep.subr.mxu0 0.0
    %431 = vmatpush2.msra.mxu0 0.0
    %432 = vmatprep.subr.mxu0 0.0
    %433 = vmatpush2.msra.mxu0 0.0
    %434 = vmatprep.subr.mxu0 0.0
    %435 = vmatpush2.msra.mxu0 0.0
    %436 = vmatprep.subr.mxu0 0.0
    %437 = vmatpush2.msra.mxu0 0.0
    %438 = vmatprep.subr.mxu0 0.0
    %439 = vmatpush2.msra.mxu0 0.0
    %440 = vmatprep.subr.mxu0 0.0
    %441 = vmatpush2.msra.mxu0 0.0
    %442 = vmatprep.subr.mxu0 0.0
    %443 = vmatpush2.msra.mxu0 0.0
    %444 = vmatprep.subr.mxu0 0.0
    %445 = vmatpush2.msra.mxu0 0.0
    %446 = vmatprep.mubr.f32.mxu0 0.0
    %447 = vmatmul.mubr.f32.gmra.mxu0 %v380
    %v448 = vpop.f32.mrf.mxu0
    %v449 = vadd.f32 0.0, %v448
    %v450 = vpop.f32.mrf.mxu0
    %451 = vdwg.mxu0
    %v453 = vrot.slane %v449, 1
    %v454 = vrot.slane %v449, 2
    %v455 = vrot.slane %v449, 3
    %v456 = vrot.slane %v449, 4
    %v457 = vrot.slane %v449, 5
    %v458 = vrot.slane %v449, 6
    %v459 = vrot.slane %v449, 7
    %v468 = vadd.f32 %v337, %v449
    %v469 = vadd.f32 %v342, %v453
    %v470 = vadd.f32 %v347, %v454
    %v471 = vadd.f32 %v352, %v455
    %v472 = vadd.f32 %v357, %v456
    %v473 = vadd.f32 %v362, %v457
    %v474 = vadd.f32 %v367, %v458
    %v475 = vadd.f32 %v372, %v459
    %v476 = vtanh.pop %v468
    %v477 = vtanh.pop %v469
    %v478 = vtanh.pop %v470
    %v479 = vtanh.pop %v471
    %v480 = vtanh.pop %v472
    %v481 = vtanh.pop %v473
    %v482 = vtanh.pop %v474
    %v483 = vtanh.pop %v475
    %v492 = vrot.slane %v477, 7
    %vm493 = vcmask 1041409
    %v494 = vsel %vm493, %v492, %v476
    %v495 = vrot.slane %v478, 6
    %vm496 = vcmask 1042434
    %v497 = vsel %vm496, %v495, %v494
    %v498 = vrot.slane %v479, 5
    %vm499 = vcmask 1043459
    %v500 = vsel %vm499, %v498, %v497
    %v501 = vrot.slane %v480, 4
    %vm502 = vcmask 1044484
    %v503 = vsel %vm502, %v501, %v500
    %v504 = vrot.slane %v481, 3
    %vm505 = vcmask 1045509
    %v506 = vsel %vm505, %v504, %v503
    %v507 = vrot.slane %v482, 2
    %vm508 = vcmask 1046534
    %v509 = vsel %vm508, %v507, %v506
    %v510 = vrot.slane %v483, 1
    %vm511 = vcmask 1047559
    %v512 = vsel %vm511, %v510, %v509
    %v513 = vsel %vm106, %v512, 0
    %515 = vmatprep.subr.mxu0 0.0
    %516 = vmatpush1.msra.mxu0 0.0
    %517 = vmatprep.subr.mxu0 0.0
    %518 = vmatpush1.msra.mxu0 0.0
    %519 = vmatprep.subr.mxu0 0.0
    %520 = vmatpush1.msra.mxu0 0.0
    %521 = vmatprep.subr.mxu0 0.0
    %522 = vmatpush1.msra.mxu0 0.0
    %523 = vmatprep.subr.mxu0 0.0
    %524 = vmatpush1.msra.mxu0 0.0
    %525 = vmatprep.subr.mxu0 0.0
    %526 = vmatpush1.msra.mxu0 0.0
    %527 = vmatprep.subr.mxu0 0.0
    %528 = vmatpush1.msra.mxu0 0.0
    %529 = vmatprep.subr.mxu0 0.0
    %530 = vmatpush1.msra.mxu0 0.0
    %531 = vmatprep.subr.mxu0 0.0
    %532 = vmatpush1.msra.mxu0 0.0
    %533 = vmatprep.subr.mxu0 0.0
    %534 = vmatpush1.msra.mxu0 0.0
    %535 = vmatprep.subr.mxu0 0.0
    %536 = vmatpush1.msra.mxu0 0.0
    %537 = vmatprep.subr.mxu0 0.0
    %538 = vmatpush1.msra.mxu0 0.0
    %539 = vmatprep.subr.mxu0 0.0
    %540 = vmatpush1.msra.mxu0 %v378
    %541 = vmatprep.subr.mxu0 0.0
    %542 = vmatpush1.msra.mxu0 %v377
    %543 = vmatprep.subr.mxu0 0.0
    %544 = vmatpush1.msra.mxu0 %v376
    %545 = vmatprep.subr.mxu0 0.0
    %546 = vmatpush1.msra.mxu0 %v375
    %547 = vmatprep.subr.mxu0 0.0
    %548 = vmatpush2.msra.mxu0 0.0
    %549 = vmatprep.subr.mxu0 0.0
    %550 = vmatpush2.msra.mxu0 0.0
    %551 = vmatprep.subr.mxu0 0.0
    %552 = vmatpush2.msra.mxu0 0.0
    %553 = vmatprep.subr.mxu0 0.0
    %554 = vmatpush2.msra.mxu0 0.0
    %555 = vmatprep.subr.mxu0 0.0
    %556 = vmatpush2.msra.mxu0 0.0
    %557 = vmatprep.subr.mxu0 0.0
    %558 = vmatpush2.msra.mxu0 0.0
    %559 = vmatprep.subr.mxu0 0.0
    %560 = vmatpush2.msra.mxu0 0.0
    %561 = vmatprep.subr.mxu0 0.0
    %562 = vmatpush2.msra.mxu0 0.0
    %563 = vmatprep.subr.mxu0 0.0
    %564 = vmatpush2.msra.mxu0 0.0
    %565 = vmatprep.subr.mxu0 0.0
    %566 = vmatpush2.msra.mxu0 0.0
    %567 = vmatprep.subr.mxu0 0.0
    %568 = vmatpush2.msra.mxu0 0.0
    %569 = vmatprep.subr.mxu0 0.0
    %570 = vmatpush2.msra.mxu0 0.0
    %571 = vmatprep.subr.mxu0 0.0
    %572 = vmatpush2.msra.mxu0 0.0
    %573 = vmatprep.subr.mxu0 0.0
    %574 = vmatpush2.msra.mxu0 0.0
    %575 = vmatprep.subr.mxu0 0.0
    %576 = vmatpush2.msra.mxu0 0.0
    %577 = vmatprep.subr.mxu0 0.0
    %578 = vmatpush2.msra.mxu0 0.0
    %579 = vmatprep.mubr.f32.mxu0 0.0
    %580 = vmatmul.mubr.f32.gmra.mxu0 %v513
    %v581 = vpop.f32.mrf.mxu0
    %v582 = vadd.f32 0.0, %v581
    %v583 = vpop.f32.mrf.mxu0
    %584 = vdwg.mxu0
    %v586 = vrot.slane %v582, 7
    %v587 = vrot.slane %v582, 1
    %v588 = vrot.slane %v582, 2
    %v589 = vrot.slane %v582, 3
    %v590 = vrot.slane %v582, 4
    %v591 = vrot.slane %v582, 5
    %v592 = vrot.slane %v582, 6
    %v601 = vadd.f32 %v337, %v586
    %v602 = vadd.f32 %v342, %v582
    %v603 = vadd.f32 %v347, %v587
    %v604 = vadd.f32 %v352, %v588
    %v605 = vadd.f32 %v357, %v589
    %v606 = vadd.f32 %v362, %v590
    %v607 = vadd.f32 %v367, %v591
    %v608 = vadd.f32 %v372, %v592
    %v609 = vtanh.pop %v601
    %v610 = vtanh.pop %v602
    %v611 = vtanh.pop %v603
    %v612 = vtanh.pop %v604
    %v613 = vtanh.pop %v605
    %v614 = vtanh.pop %v606
    %v615 = vtanh.pop %v607
    %v616 = vtanh.pop %v608
    %v625 = vrot.slane %v609, 1
    %v626 = vsel %vm493, %v610, %v625
    %v627 = vrot.slane %v611, 7
    %v628 = vsel %vm496, %v627, %v626
    %v629 = vrot.slane %v612, 6
    %v630 = vsel %vm499, %v629, %v628
    %v631 = vrot.slane %v613, 5
    %v632 = vsel %vm502, %v631, %v630
    %v633 = vrot.slane %v614, 4
    %v634 = vsel %vm505, %v633, %v632
    %v635 = vrot.slane %v615, 3
    %v636 = vsel %vm508, %v635, %v634
    %v637 = vrot.slane %v616, 2
    %v638 = vsel %vm511, %v637, %v636
    %v639 = vsel %vm106, %v638, 0
    %641 = vmatprep.subr.mxu0 0.0
    %642 = vmatpush1.msra.mxu0 0.0
    %643 = vmatprep.subr.mxu0 0.0
    %644 = vmatpush1.msra.mxu0 0.0
    %645 = vmatprep.subr.mxu0 0.0
    %646 = vmatpush1.msra.mxu0 0.0
    %647 = vmatprep.subr.mxu0 0.0
    %648 = vmatpush1.msra.mxu0 0.0
    %649 = vmatprep.subr.mxu0 0.0
    %650 = vmatpush1.msra.mxu0 0.0
    %651 = vmatprep.subr.mxu0 0.0
    %652 = vmatpush1.msra.mxu0 0.0
    %653 = vmatprep.subr.mxu0 0.0
    %654 = vmatpush1.msra.mxu0 0.0
    %655 = vmatprep.subr.mxu0 0.0
    %656 = vmatpush1.msra.mxu0 0.0
    %657 = vmatprep.subr.mxu0 0.0
    %658 = vmatpush1.msra.mxu0 0.0
    %659 = vmatprep.subr.mxu0 0.0
    %660 = vmatpush1.msra.mxu0 0.0
    %661 = vmatprep.subr.mxu0 0.0
    %662 = vmatpush1.msra.mxu0 0.0
    %663 = vmatprep.subr.mxu0 0.0
    %664 = vmatpush1.msra.mxu0 0.0
    %665 = vmatprep.subr.mxu0 0.0
    %666 = vmatpush1.msra.mxu0 %v378
    %667 = vmatprep.subr.mxu0 0.0
    %668 = vmatpush1.msra.mxu0 %v377
    %669 = vmatprep.subr.mxu0 0.0
    %670 = vmatpush1.msra.mxu0 %v376
    %671 = vmatprep.subr.mxu0 0.0
    %672 = vmatpush1.msra.mxu0 %v375
    %673 = vmatprep.subr.mxu0 0.0
    %674 = vmatpush2.msra.mxu0 0.0
    %675 = vmatprep.subr.mxu0 0.0
    %676 = vmatpush2.msra.mxu0 0.0
    %677 = vmatprep.subr.mxu0 0.0
    %678 = vmatpush2.msra.mxu0 0.0
    %679 = vmatprep.subr.mxu0 0.0
    %680 = vmatpush2.msra.mxu0 0.0
    %681 = vmatprep.subr.mxu0 0.0
    %682 = vmatpush2.msra.mxu0 0.0
    %683 = vmatprep.subr.mxu0 0.0
    %684 = vmatpush2.msra.mxu0 0.0
    %685 = vmatprep.subr.mxu0 0.0
    %686 = vmatpush2.msra.mxu0 0.0
    %687 = vmatprep.subr.mxu0 0.0
    %688 = vmatpush2.msra.mxu0 0.0
    %689 = vmatprep.subr.mxu0 0.0
    %690 = vmatpush2.msra.mxu0 0.0
    %691 = vmatprep.subr.mxu0 0.0
    %692 = vmatpush2.msra.mxu0 0.0
    %693 = vmatprep.subr.mxu0 0.0
    %694 = vmatpush2.msra.mxu0 0.0
    %695 = vmatprep.subr.mxu0 0.0
    %696 = vmatpush2.msra.mxu0 0.0
    %697 = vmatprep.subr.mxu0 0.0
    %698 = vmatpush2.msra.mxu0 0.0
    %699 = vmatprep.subr.mxu0 0.0
    %700 = vmatpush2.msra.mxu0 0.0
    %701 = vmatprep.subr.mxu0 0.0
    %702 = vmatpush2.msra.mxu0 0.0
    %703 = vmatprep.subr.mxu0 0.0
    %704 = vmatpush2.msra.mxu0 0.0
    %705 = vmatprep.mubr.f32.mxu0 0.0
    %706 = vmatmul.mubr.f32.gmra.mxu0 %v639
    %v707 = vpop.f32.mrf.mxu0
    %v708 = vadd.f32 0.0, %v707
    %v709 = vpop.f32.mrf.mxu0
    %710 = vdwg.mxu0
    %v712 = vrot.slane %v708, 6
    %v713 = vrot.slane %v708, 7
    %v714 = vrot.slane %v708, 1
    %v715 = vrot.slane %v708, 2
    %v716 = vrot.slane %v708, 3
    %v717 = vrot.slane %v708, 4
    %v718 = vrot.slane %v708, 5
    %v727 = vadd.f32 %v337, %v712
    %v728 = vadd.f32 %v342, %v713
    %v729 = vadd.f32 %v347, %v708
    %v730 = vadd.f32 %v352, %v714
    %v731 = vadd.f32 %v357, %v715
    %v732 = vadd.f32 %v362, %v716
    %v733 = vadd.f32 %v367, %v717
    %v734 = vadd.f32 %v372, %v718
    %v735 = vtanh.pop %v727
    %v736 = vtanh.pop %v728
    %v737 = vtanh.pop %v729
    %v738 = vtanh.pop %v730
    %v739 = vtanh.pop %v731
    %v740 = vtanh.pop %v732
    %v741 = vtanh.pop %v733
    %v742 = vtanh.pop %v734
    %v751 = vrot.slane %v735, 2
    %v752 = vrot.slane %v736, 1
    %v753 = vsel %vm493, %v752, %v751
    %v754 = vsel %vm496, %v737, %v753
    %v755 = vrot.slane %v738, 7
    %v756 = vsel %vm499, %v755, %v754
    %v757 = vrot.slane %v739, 6
    %v758 = vsel %vm502, %v757, %v756
    %v759 = vrot.slane %v740, 5
    %v760 = vsel %vm505, %v759, %v758
    %v761 = vrot.slane %v741, 4
    %v762 = vsel %vm508, %v761, %v760
    %v763 = vrot.slane %v742, 3
    %v764 = vsel %vm511, %v763, %v762
    %v765 = vsel %vm106, %v764, 0
    %767 = vmatprep.subr.mxu0 0.0
    %768 = vmatpush1.msra.mxu0 0.0
    %769 = vmatprep.subr.mxu0 0.0
    %770 = vmatpush1.msra.mxu0 0.0
    %771 = vmatprep.subr.mxu0 0.0
    %772 = vmatpush1.msra.mxu0 0.0
    %773 = vmatprep.subr.mxu0 0.0
    %774 = vmatpush1.msra.mxu0 0.0
    %775 = vmatprep.subr.mxu0 0.0
    %776 = vmatpush1.msra.mxu0 0.0
    %777 = vmatprep.subr.mxu0 0.0
    %778 = vmatpush1.msra.mxu0 0.0
    %779 = vmatprep.subr.mxu0 0.0
    %780 = vmatpush1.msra.mxu0 0.0
    %781 = vmatprep.subr.mxu0 0.0
    %782 = vmatpush1.msra.mxu0 0.0
    %783 = vmatprep.subr.mxu0 0.0
    %784 = vmatpush1.msra.mxu0 0.0
    %785 = vmatprep.subr.mxu0 0.0
    %786 = vmatpush1.msra.mxu0 0.0
    %787 = vmatprep.subr.mxu0 0.0
    %788 = vmatpush1.msra.mxu0 0.0
    %789 = vmatprep.subr.mxu0 0.0
    %790 = vmatpush1.msra.mxu0 0.0
    %791 = vmatprep.subr.mxu0 0.0
    %792 = vmatpush1.msra.mxu0 %v378
    %793 = vmatprep.subr.mxu0 0.0
    %794 = vmatpush1.msra.mxu0 %v377
    %795 = vmatprep.subr.mxu0 0.0
    %796 = vmatpush1.msra.mxu0 %v376
    %797 = vmatprep.subr.mxu0 0.0
    %798 = vmatpush1.msra.mxu0 %v375
    %799 = vmatprep.subr.mxu0 0.0
    %800 = vmatpush2.msra.mxu0 0.0
    %801 = vmatprep.subr.mxu0 0.0
    %802 = vmatpush2.msra.mxu0 0.0
    %803 = vmatprep.subr.mxu0 0.0
    %804 = vmatpush2.msra.mxu0 0.0
    %805 = vmatprep.subr.mxu0 0.0
    %806 = vmatpush2.msra.mxu0 0.0
    %807 = vmatprep.subr.mxu0 0.0
    %808 = vmatpush2.msra.mxu0 0.0
    %809 = vmatprep.subr.mxu0 0.0
    %810 = vmatpush2.msra.mxu0 0.0
    %811 = vmatprep.subr.mxu0 0.0
    %812 = vmatpush2.msra.mxu0 0.0
    %813 = vmatprep.subr.mxu0 0.0
    %814 = vmatpush2.msra.mxu0 0.0
    %815 = vmatprep.subr.mxu0 0.0
    %816 = vmatpush2.msra.mxu0 0.0
    %817 = vmatprep.subr.mxu0 0.0
    %818 = vmatpush2.msra.mxu0 0.0
    %819 = vmatprep.subr.mxu0 0.0
    %820 = vmatpush2.msra.mxu0 0.0
    %821 = vmatprep.subr.mxu0 0.0
    %822 = vmatpush2.msra.mxu0 0.0
    %823 = vmatprep.subr.mxu0 0.0
    %824 = vmatpush2.msra.mxu0 0.0
    %825 = vmatprep.subr.mxu0 0.0
    %826 = vmatpush2.msra.mxu0 0.0
    %827 = vmatprep.subr.mxu0 0.0
    %828 = vmatpush2.msra.mxu0 0.0
    %829 = vmatprep.subr.mxu0 0.0
    %830 = vmatpush2.msra.mxu0 0.0
    %831 = vmatprep.mubr.f32.mxu0 0.0
    %832 = vmatmul.mubr.f32.gmra.mxu0 %v765
    %v833 = vpop.f32.mrf.mxu0
    %v834 = vadd.f32 0.0, %v833
    %v835 = vpop.f32.mrf.mxu0
    %836 = vdwg.mxu0
    %v838 = vrot.slane %v834, 5
    %v839 = vrot.slane %v834, 6
    %v840 = vrot.slane %v834, 7
    %v841 = vrot.slane %v834, 1
    %v842 = vrot.slane %v834, 2
    %v843 = vrot.slane %v834, 3
    %v844 = vrot.slane %v834, 4
    %v853 = vadd.f32 %v337, %v838
    %v854 = vadd.f32 %v342, %v839
    %v855 = vadd.f32 %v347, %v840
    %v856 = vadd.f32 %v352, %v834
    %v857 = vadd.f32 %v357, %v841
    %v858 = vadd.f32 %v362, %v842
    %v859 = vadd.f32 %v367, %v843
    %v860 = vadd.f32 %v372, %v844
    %v861 = vtanh.pop %v853
    %v862 = vtanh.pop %v854
    %v863 = vtanh.pop %v855
    %v864 = vtanh.pop %v856
    %v865 = vtanh.pop %v857
    %v866 = vtanh.pop %v858
    %v867 = vtanh.pop %v859
    %v868 = vtanh.pop %v860
    %v877 = vrot.slane %v861, 3
    %v878 = vrot.slane %v862, 2
    %v879 = vsel %vm493, %v878, %v877
    %v880 = vrot.slane %v863, 1
    %v881 = vsel %vm496, %v880, %v879
    %v882 = vsel %vm499, %v864, %v881
    %v883 = vrot.slane %v865, 7
    %v884 = vsel %vm502, %v883, %v882
    %v885 = vrot.slane %v866, 6
    %v886 = vsel %vm505, %v885, %v884
    %v887 = vrot.slane %v867, 5
    %v888 = vsel %vm508, %v887, %v886
    %v889 = vrot.slane %v868, 4
    %v890 = vsel %vm511, %v889, %v888
    %v891 = vsel %vm106, %v890, 0
    %893 = vmatprep.subr.mxu0 0.0
    %894 = vmatpush1.msra.mxu0 0.0
    %895 = vmatprep.subr.mxu0 0.0
    %896 = vmatpush1.msra.mxu0 0.0
    %897 = vmatprep.subr.mxu0 0.0
    %898 = vmatpush1.msra.mxu0 0.0
    %899 = vmatprep.subr.mxu0 0.0
    %900 = vmatpush1.msra.mxu0 0.0
    %901 = vmatprep.subr.mxu0 0.0
    %902 = vmatpush1.msra.mxu0 0.0
    %903 = vmatprep.subr.mxu0 0.0
    %904 = vmatpush1.msra.mxu0 0.0
    %905 = vmatprep.subr.mxu0 0.0
    %906 = vmatpush1.msra.mxu0 0.0
    %907 = vmatprep.subr.mxu0 0.0
    %908 = vmatpush1.msra.mxu0 0.0
    %909 = vmatprep.subr.mxu0 0.0
    %910 = vmatpush1.msra.mxu0 0.0
    %911 = vmatprep.subr.mxu0 0.0
    %912 = vmatpush1.msra.mxu0 0.0
    %913 = vmatprep.subr.mxu0 0.0
    %914 = vmatpush1.msra.mxu0 0.0
    %915 = vmatprep.subr.mxu0 0.0
    %916 = vmatpush1.msra.mxu0 0.0
    %917 = vmatprep.subr.mxu0 0.0
    %918 = vmatpush1.msra.mxu0 %v378
    %919 = vmatprep.subr.mxu0 0.0
    %920 = vmatpush1.msra.mxu0 %v377
    %921 = vmatprep.subr.mxu0 0.0
    %922 = vmatpush1.msra.mxu0 %v376
    %923 = vmatprep.subr.mxu0 0.0
    %924 = vmatpush1.msra.mxu0 %v375
    %925 = vmatprep.subr.mxu0 0.0
    %926 = vmatpush2.msra.mxu0 0.0
    %927 = vmatprep.subr.mxu0 0.0
    %928 = vmatpush2.msra.mxu0 0.0
    %929 = vmatprep.subr.mxu0 0.0
    %930 = vmatpush2.msra.mxu0 0.0
    %931 = vmatprep.subr.mxu0 0.0
    %932 = vmatpush2.msra.mxu0 0.0
    %933 = vmatprep.subr.mxu0 0.0
    %934 = vmatpush2.msra.mxu0 0.0
    %935 = vmatprep.subr.mxu0 0.0
    %936 = vmatpush2.msra.mxu0 0.0
    %937 = vmatprep.subr.mxu0 0.0
    %938 = vmatpush2.msra.mxu0 0.0
    %939 = vmatprep.subr.mxu0 0.0
    %940 = vmatpush2.msra.mxu0 0.0
    %941 = vmatprep.subr.mxu0 0.0
    %942 = vmatpush2.msra.mxu0 0.0
    %943 = vmatprep.subr.mxu0 0.0
    %944 = vmatpush2.msra.mxu0 0.0
    %945 = vmatprep.subr.mxu0 0.0
    %946 = vmatpush2.msra.mxu0 0.0
    %947 = vmatprep.subr.mxu0 0.0
    %948 = vmatpush2.msra.mxu0 0.0
    %949 = vmatprep.subr.mxu0 0.0
    %950 = vmatpush2.msra.mxu0 0.0
    %951 = vmatprep.subr.mxu0 0.0
    %952 = vmatpush2.msra.mxu0 0.0
    %953 = vmatprep.subr.mxu0 0.0
    %954 = vmatpush2.msra.mxu0 0.0
    %955 = vmatprep.subr.mxu0 0.0
    %956 = vmatpush2.msra.mxu0 0.0
    %957 = vmatprep.mubr.f32.mxu0 0.0
    %958 = vmatmul.mubr.f32.gmra.mxu0 %v891
    %v959 = vpop.f32.mrf.mxu0
    %v960 = vadd.f32 0.0, %v959
    %v961 = vpop.f32.mrf.mxu0
    %962 = vdwg.mxu0
    %v964 = vrot.slane %v960, 4
    %v965 = vrot.slane %v960, 5
    %v966 = vrot.slane %v960, 6
    %v967 = vrot.slane %v960, 7
    %v968 = vrot.slane %v960, 1
    %v969 = vrot.slane %v960, 2
    %v970 = vrot.slane %v960, 3
    %v979 = vadd.f32 %v337, %v964
    %v980 = vadd.f32 %v342, %v965
    %v981 = vadd.f32 %v347, %v966
    %v982 = vadd.f32 %v352, %v967
    %v983 = vadd.f32 %v357, %v960
    %v984 = vadd.f32 %v362, %v968
    %v985 = vadd.f32 %v367, %v969
    %v986 = vadd.f32 %v372, %v970
    %v987 = vtanh.pop %v979
    %v988 = vtanh.pop %v980
    %v989 = vtanh.pop %v981
    %v990 = vtanh.pop %v982
    %v991 = vtanh.pop %v983
    %v992 = vtanh.pop %v984
    %v993 = vtanh.pop %v985
    %v994 = vtanh.pop %v986
    %v1003 = vrot.slane %v987, 4
    %v1004 = vrot.slane %v988, 3
    %v1005 = vsel %vm493, %v1004, %v1003
    %v1006 = vrot.slane %v989, 2
    %v1007 = vsel %vm496, %v1006, %v1005
    %v1008 = vrot.slane %v990, 1
    %v1009 = vsel %vm499, %v1008, %v1007
    %v1010 = vsel %vm502, %v991, %v1009
    %v1011 = vrot.slane %v992, 7
    %v1012 = vsel %vm505, %v1011, %v1010
    %v1013 = vrot.slane %v993, 6
    %v1014 = vsel %vm508, %v1013, %v1012
    %v1015 = vrot.slane %v994, 5
    %v1016 = vsel %vm511, %v1015, %v1014
    %v1017 = vsel %vm106, %v1016, 0
    %1019 = vmatprep.subr.mxu0 0.0
    %1020 = vmatpush1.msra.mxu0 0.0
    %1021 = vmatprep.subr.mxu0 0.0
    %1022 = vmatpush1.msra.mxu0 0.0
    %1023 = vmatprep.subr.mxu0 0.0
    %1024 = vmatpush1.msra.mxu0 0.0
    %1025 = vmatprep.subr.mxu0 0.0
    %1026 = vmatpush1.msra.mxu0 0.0
    %1027 = vmatprep.subr.mxu0 0.0
    %1028 = vmatpush1.msra.mxu0 0.0
    %1029 = vmatprep.subr.mxu0 0.0
    %1030 = vmatpush1.msra.mxu0 0.0
    %1031 = vmatprep.subr.mxu0 0.0
    %1032 = vmatpush1.msra.mxu0 0.0
    %1033 = vmatprep.subr.mxu0 0.0
    %1034 = vmatpush1.msra.mxu0 0.0
    %1035 = vmatprep.subr.mxu0 0.0
    %1036 = vmatpush1.msra.mxu0 0.0
    %1037 = vmatprep.subr.mxu0 0.0
    %1038 = vmatpush1.msra.mxu0 0.0
    %1039 = vmatprep.subr.mxu0 0.0
    %1040 = vmatpush1.msra.mxu0 0.0
    %1041 = vmatprep.subr.mxu0 0.0
    %1042 = vmatpush1.msra.mxu0 0.0
    %1043 = vmatprep.subr.mxu0 0.0
    %1044 = vmatpush1.msra.mxu0 %v378
    %1045 = vmatprep.subr.mxu0 0.0
    %1046 = vmatpush1.msra.mxu0 %v377
    %1047 = vmatprep.subr.mxu0 0.0
    %1048 = vmatpush1.msra.mxu0 %v376
    %1049 = vmatprep.subr.mxu0 0.0
    %1050 = vmatpush1.msra.mxu0 %v375
    %1051 = vmatprep.subr.mxu0 0.0
    %1052 = vmatpush2.msra.mxu0 0.0
    %1053 = vmatprep.subr.mxu0 0.0
    %1054 = vmatpush2.msra.mxu0 0.0
    %1055 = vmatprep.subr.mxu0 0.0
    %1056 = vmatpush2.msra.mxu0 0.0
    %1057 = vmatprep.subr.mxu0 0.0
    %1058 = vmatpush2.msra.mxu0 0.0
    %1059 = vmatprep.subr.mxu0 0.0
    %1060 = vmatpush2.msra.mxu0 0.0
    %1061 = vmatprep.subr.mxu0 0.0
    %1062 = vmatpush2.msra.mxu0 0.0
    %1063 = vmatprep.subr.mxu0 0.0
    %1064 = vmatpush2.msra.mxu0 0.0
    %1065 = vmatprep.subr.mxu0 0.0
    %1066 = vmatpush2.msra.mxu0 0.0
    %1067 = vmatprep.subr.mxu0 0.0
    %1068 = vmatpush2.msra.mxu0 0.0
    %1069 = vmatprep.subr.mxu0 0.0
    %1070 = vmatpush2.msra.mxu0 0.0
    %1071 = vmatprep.subr.mxu0 0.0
    %1072 = vmatpush2.msra.mxu0 0.0
    %1073 = vmatprep.subr.mxu0 0.0
    %1074 = vmatpush2.msra.mxu0 0.0
    %1075 = vmatprep.subr.mxu0 0.0
    %1076 = vmatpush2.msra.mxu0 0.0
    %1077 = vmatprep.subr.mxu0 0.0
    %1078 = vmatpush2.msra.mxu0 0.0
    %1079 = vmatprep.subr.mxu0 0.0
    %1080 = vmatpush2.msra.mxu0 0.0
    %1081 = vmatprep.subr.mxu0 0.0
    %1082 = vmatpush2.msra.mxu0 0.0
    %1083 = vmatprep.mubr.f32.mxu0 0.0
    %1084 = vmatmul.mubr.f32.gmra.mxu0 %v1017
    %v1085 = vpop.f32.mrf.mxu0
    %v1086 = vadd.f32 0.0, %v1085
    %v1087 = vpop.f32.mrf.mxu0
    %1088 = vdwg.mxu0
    %v1090 = vrot.slane %v1086, 3
    %v1091 = vrot.slane %v1086, 4
    %v1092 = vrot.slane %v1086, 5
    %v1093 = vrot.slane %v1086, 6
    %v1094 = vrot.slane %v1086, 7
    %v1095 = vrot.slane %v1086, 1
    %v1096 = vrot.slane %v1086, 2
    %v1105 = vadd.f32 %v337, %v1090
    %v1106 = vadd.f32 %v342, %v1091
    %v1107 = vadd.f32 %v347, %v1092
    %v1108 = vadd.f32 %v352, %v1093
    %v1109 = vadd.f32 %v357, %v1094
    %v1110 = vadd.f32 %v362, %v1086
    %v1111 = vadd.f32 %v367, %v1095
    %v1112 = vadd.f32 %v372, %v1096
    %v1113 = vtanh.pop %v1105
    %v1114 = vtanh.pop %v1106
    %v1115 = vtanh.pop %v1107
    %v1116 = vtanh.pop %v1108
    %v1117 = vtanh.pop %v1109
    %v1118 = vtanh.pop %v1110
    %v1119 = vtanh.pop %v1111
    %v1120 = vtanh.pop %v1112
    %v1129 = vrot.slane %v1113, 5
    %v1130 = vrot.slane %v1114, 4
    %v1131 = vsel %vm493, %v1130, %v1129
    %v1132 = vrot.slane %v1115, 3
    %v1133 = vsel %vm496, %v1132, %v1131
    %v1134 = vrot.slane %v1116, 2
    %v1135 = vsel %vm499, %v1134, %v1133
    %v1136 = vrot.slane %v1117, 1
    %v1137 = vsel %vm502, %v1136, %v1135
    %v1138 = vsel %vm505, %v1118, %v1137
    %v1139 = vrot.slane %v1119, 7
    %v1140 = vsel %vm508, %v1139, %v1138
    %v1141 = vrot.slane %v1120, 6
    %v1142 = vsel %vm511, %v1141, %v1140
    %v1143 = vsel %vm106, %v1142, 0
    %1145 = vmatprep.subr.mxu0 0.0
    %1146 = vmatpush1.msra.mxu0 0.0
    %1147 = vmatprep.subr.mxu0 0.0
    %1148 = vmatpush1.msra.mxu0 0.0
    %1149 = vmatprep.subr.mxu0 0.0
    %1150 = vmatpush1.msra.mxu0 0.0
    %1151 = vmatprep.subr.mxu0 0.0
    %1152 = vmatpush1.msra.mxu0 0.0
    %1153 = vmatprep.subr.mxu0 0.0
    %1154 = vmatpush1.msra.mxu0 0.0
    %1155 = vmatprep.subr.mxu0 0.0
    %1156 = vmatpush1.msra.mxu0 0.0
    %1157 = vmatprep.subr.mxu0 0.0
    %1158 = vmatpush1.msra.mxu0 0.0
    %1159 = vmatprep.subr.mxu0 0.0
    %1160 = vmatpush1.msra.mxu0 0.0
    %1161 = vmatprep.subr.mxu0 0.0
    %1162 = vmatpush1.msra.mxu0 0.0
    %1163 = vmatprep.subr.mxu0 0.0
    %1164 = vmatpush1.msra.mxu0 0.0
    %1165 = vmatprep.subr.mxu0 0.0
    %1166 = vmatpush1.msra.mxu0 0.0
    %1167 = vmatprep.subr.mxu0 0.0
    %1168 = vmatpush1.msra.mxu0 0.0
    %1169 = vmatprep.subr.mxu0 0.0
    %1170 = vmatpush1.msra.mxu0 %v378
    %1171 = vmatprep.subr.mxu0 0.0
    %1172 = vmatpush1.msra.mxu0 %v377
    %1173 = vmatprep.subr.mxu0 0.0
    %1174 = vmatpush1.msra.mxu0 %v376
    %1175 = vmatprep.subr.mxu0 0.0
    %1176 = vmatpush1.msra.mxu0 %v375
    %1177 = vmatprep.subr.mxu0 0.0
    %1178 = vmatpush2.msra.mxu0 0.0
    %1179 = vmatprep.subr.mxu0 0.0
    %1180 = vmatpush2.msra.mxu0 0.0
    %1181 = vmatprep.subr.mxu0 0.0
    %1182 = vmatpush2.msra.mxu0 0.0
    %1183 = vmatprep.subr.mxu0 0.0
    %1184 = vmatpush2.msra.mxu0 0.0
    %1185 = vmatprep.subr.mxu0 0.0
    %1186 = vmatpush2.msra.mxu0 0.0
    %1187 = vmatprep.subr.mxu0 0.0
    %1188 = vmatpush2.msra.mxu0 0.0
    %1189 = vmatprep.subr.mxu0 0.0
    %1190 = vmatpush2.msra.mxu0 0.0
    %1191 = vmatprep.subr.mxu0 0.0
    %1192 = vmatpush2.msra.mxu0 0.0
    %1193 = vmatprep.subr.mxu0 0.0
    %1194 = vmatpush2.msra.mxu0 0.0
    %1195 = vmatprep.subr.mxu0 0.0
    %1196 = vmatpush2.msra.mxu0 0.0
    %1197 = vmatprep.subr.mxu0 0.0
    %1198 = vmatpush2.msra.mxu0 0.0
    %1199 = vmatprep.subr.mxu0 0.0
    %1200 = vmatpush2.msra.mxu0 0.0
    %1201 = vmatprep.subr.mxu0 0.0
    %1202 = vmatpush2.msra.mxu0 0.0
    %1203 = vmatprep.subr.mxu0 0.0
    %1204 = vmatpush2.msra.mxu0 0.0
    %1205 = vmatprep.subr.mxu0 0.0
    %1206 = vmatpush2.msra.mxu0 0.0
    %1207 = vmatprep.subr.mxu0 0.0
    %1208 = vmatpush2.msra.mxu0 0.0
    %1209 = vmatprep.mubr.f32.mxu0 0.0
    %1210 = vmatmul.mubr.f32.gmra.mxu0 %v1143
    %v1211 = vpop.f32.mrf.mxu0
    %v1212 = vadd.f32 0.0, %v1211
    %v1213 = vpop.f32.mrf.mxu0
    %1214 = vdwg.mxu0
    %v1216 = vrot.slane %v1212, 2
    %v1217 = vrot.slane %v1212, 3
    %v1218 = vrot.slane %v1212, 4
    %v1219 = vrot.slane %v1212, 5
    %v1220 = vrot.slane %v1212, 6
    %v1221 = vrot.slane %v1212, 7
    %v1222 = vrot.slane %v1212, 1
    %v1231 = vadd.f32 %v337, %v1216
    %v1232 = vadd.f32 %v342, %v1217
    %v1233 = vadd.f32 %v347, %v1218
    %v1234 = vadd.f32 %v352, %v1219
    %v1235 = vadd.f32 %v357, %v1220
    %v1236 = vadd.f32 %v362, %v1221
    %v1237 = vadd.f32 %v367, %v1212
    %v1238 = vadd.f32 %v372, %v1222
    %v1239 = vtanh.pop %v1231
    %v1240 = vtanh.pop %v1232
    %v1241 = vtanh.pop %v1233
    %v1242 = vtanh.pop %v1234
    %v1243 = vtanh.pop %v1235
    %v1244 = vtanh.pop %v1236
    %v1245 = vtanh.pop %v1237
    %v1246 = vtanh.pop %v1238
    %v1255 = vrot.slane %v1239, 6
    %v1256 = vrot.slane %v1240, 5
    %v1257 = vsel %vm493, %v1256, %v1255
    %v1258 = vrot.slane %v1241, 4
    %v1259 = vsel %vm496, %v1258, %v1257
    %v1260 = vrot.slane %v1242, 3
    %v1261 = vsel %vm499, %v1260, %v1259
    %v1262 = vrot.slane %v1243, 2
    %v1263 = vsel %vm502, %v1262, %v1261
    %v1264 = vrot.slane %v1244, 1
    %v1265 = vsel %vm505, %v1264, %v1263
    %v1266 = vsel %vm508, %v1245, %v1265
    %v1267 = vrot.slane %v1246, 7
    %v1268 = vsel %vm511, %v1267, %v1266
    %v1269 = vsel %vm106, %v1268, 0
    %1271 = vmatprep.subr.mxu0 0.0
    %1272 = vmatpush1.msra.mxu0 0.0
    %1273 = vmatprep.subr.mxu0 0.0
    %1274 = vmatpush1.msra.mxu0 0.0
    %1275 = vmatprep.subr.mxu0 0.0
    %1276 = vmatpush1.msra.mxu0 0.0
    %1277 = vmatprep.subr.mxu0 0.0
    %1278 = vmatpush1.msra.mxu0 0.0
    %1279 = vmatprep.subr.mxu0 0.0
    %1280 = vmatpush1.msra.mxu0 0.0
    %1281 = vmatprep.subr.mxu0 0.0
    %1282 = vmatpush1.msra.mxu0 0.0
    %1283 = vmatprep.subr.mxu0 0.0
    %1284 = vmatpush1.msra.mxu0 0.0
    %1285 = vmatprep.subr.mxu0 0.0
    %1286 = vmatpush1.msra.mxu0 0.0
    %1287 = vmatprep.subr.mxu0 0.0
    %1288 = vmatpush1.msra.mxu0 0.0
    %1289 = vmatprep.subr.mxu0 0.0
    %1290 = vmatpush1.msra.mxu0 0.0
    %1291 = vmatprep.subr.mxu0 0.0
    %1292 = vmatpush1.msra.mxu0 0.0
    %1293 = vmatprep.subr.mxu0 0.0
    %1294 = vmatpush1.msra.mxu0 0.0
    %1295 = vmatprep.subr.mxu0 0.0
    %1296 = vmatpush1.msra.mxu0 %v378
    %1297 = vmatprep.subr.mxu0 0.0
    %1298 = vmatpush1.msra.mxu0 %v377
    %1299 = vmatprep.subr.mxu0 0.0
    %1300 = vmatpush1.msra.mxu0 %v376
    %1301 = vmatprep.subr.mxu0 0.0
    %1302 = vmatpush1.msra.mxu0 %v375
    %1303 = vmatprep.subr.mxu0 0.0
    %1304 = vmatpush2.msra.mxu0 0.0
    %1305 = vmatprep.subr.mxu0 0.0
    %1306 = vmatpush2.msra.mxu0 0.0
    %1307 = vmatprep.subr.mxu0 0.0
    %1308 = vmatpush2.msra.mxu0 0.0
    %1309 = vmatprep.subr.mxu0 0.0
    %1310 = vmatpush2.msra.mxu0 0.0
    %1311 = vmatprep.subr.mxu0 0.0
    %1312 = vmatpush2.msra.mxu0 0.0
    %1313 = vmatprep.subr.mxu0 0.0
    %1314 = vmatpush2.msra.mxu0 0.0
    %1315 = vmatprep.subr.mxu0 0.0
    %1316 = vmatpush2.msra.mxu0 0.0
    %1317 = vmatprep.subr.mxu0 0.0
    %1318 = vmatpush2.msra.mxu0 0.0
    %1319 = vmatprep.subr.mxu0 0.0
    %1320 = vmatpush2.msra.mxu0 0.0
    %1321 = vmatprep.subr.mxu0 0.0
    %1322 = vmatpush2.msra.mxu0 0.0
    %1323 = vmatprep.subr.mxu0 0.0
    %1324 = vmatpush2.msra.mxu0 0.0
    %1325 = vmatprep.subr.mxu0 0.0
    %1326 = vmatpush2.msra.mxu0 0.0
    %1327 = vmatprep.subr.mxu0 0.0
    %1328 = vmatpush2.msra.mxu0 0.0
    %1329 = vmatprep.subr.mxu0 0.0
    %1330 = vmatpush2.msra.mxu0 0.0
    %1331 = vmatprep.subr.mxu0 0.0
    %1332 = vmatpush2.msra.mxu0 0.0
    %1333 = vmatprep.subr.mxu0 0.0
    %1334 = vmatpush2.msra.mxu0 0.0
    %1335 = vmatprep.mubr.f32.mxu0 0.0
    %1336 = vmatmul.mubr.f32.gmra.mxu0 %v1269
    %v1337 = vpop.f32.mrf.mxu0
    %v1338 = vadd.f32 0.0, %v1337
    %v1339 = vpop.f32.mrf.mxu0
    %1340 = vdwg.mxu0
    %v1342 = vrot.slane %v1338, 1
    %v1343 = vrot.slane %v1338, 2
    %v1344 = vrot.slane %v1338, 3
    %v1345 = vrot.slane %v1338, 4
    %v1346 = vrot.slane %v1338, 5
    %v1347 = vrot.slane %v1338, 6
    %v1348 = vrot.slane %v1338, 7
    %v1357 = vadd.f32 %v337, %v1342
    %v1358 = vadd.f32 %v342, %v1343
    %v1359 = vadd.f32 %v347, %v1344
    %v1360 = vadd.f32 %v352, %v1345
    %v1361 = vadd.f32 %v357, %v1346
    %v1362 = vadd.f32 %v362, %v1347
    %v1363 = vadd.f32 %v367, %v1348
    %v1364 = vadd.f32 %v372, %v1338
    %v1365 = vtanh.pop %v1357
    %v1366 = vtanh.pop %v1358
    %v1367 = vtanh.pop %v1359
    %v1368 = vtanh.pop %v1360
    %v1369 = vtanh.pop %v1361
    %v1370 = vtanh.pop %v1362
    %v1371 = vtanh.pop %v1363
    %v1372 = vtanh.pop %v1364
    %v1373 = vld [vmem:[%s5] sm:$0xff]
    %v1374 = vld [vmem:[%s5 + $0x8] sm:$0xff]
    %v1375 = vld [vmem:[%s5 + $0x10] sm:$0xff]
    %v1376 = vld [vmem:[%s5 + $0x18] sm:$0xff]
    %v1377 = vld [vmem:[%s6] sm:$0x1]
    %v1379 = vlaneseq
    %v1380 = vshrl.u32 %v1379, 7
    %v1381 = vsub.s32 0, %v1380
    %v1382 = vrot.slane %v1377, %v1381
    %v1392 = vrot.slane %v1365, 7
    %v1393 = vrot.slane %v1366, 6
    %v1394 = vsel %vm493, %v1393, %v1392
    %v1395 = vrot.slane %v1367, 5
    %v1396 = vsel %vm496, %v1395, %v1394
    %v1397 = vrot.slane %v1368, 4
    %v1398 = vsel %vm499, %v1397, %v1396
    %v1399 = vrot.slane %v1369, 3
    %v1400 = vsel %vm502, %v1399, %v1398
    %v1401 = vrot.slane %v1370, 2
    %v1402 = vsel %vm505, %v1401, %v1400
    %v1403 = vrot.slane %v1371, 1
    %v1404 = vsel %vm508, %v1403, %v1402
    %v1405 = vsel %vm511, %v1372, %v1404
    %v1406 = vsel %vm106, %v1405, 0
    %1408 = vmatprep.subr.mxu0 0.0
    %1409 = vmatpush1.msra.mxu0 0.0
    %1410 = vmatprep.subr.mxu0 0.0
    %1411 = vmatpush1.msra.mxu0 0.0
    %1412 = vmatprep.subr.mxu0 0.0
    %1413 = vmatpush1.msra.mxu0 0.0
    %1414 = vmatprep.subr.mxu0 0.0
    %1415 = vmatpush1.msra.mxu0 0.0
    %1416 = vmatprep.subr.mxu0 0.0
    %1417 = vmatpush1.msra.mxu0 0.0
    %1418 = vmatprep.subr.mxu0 0.0
    %1419 = vmatpush1.msra.mxu0 0.0
    %1420 = vmatprep.subr.mxu0 0.0
    %1421 = vmatpush1.msra.mxu0 0.0
    %1422 = vmatprep.subr.mxu0 0.0
    %1423 = vmatpush1.msra.mxu0 0.0
    %1424 = vmatprep.subr.mxu0 0.0
    %1425 = vmatpush1.msra.mxu0 0.0
    %1426 = vmatprep.subr.mxu0 0.0
    %1427 = vmatpush1.msra.mxu0 0.0
    %1428 = vmatprep.subr.mxu0 0.0
    %1429 = vmatpush1.msra.mxu0 0.0
    %1430 = vmatprep.subr.mxu0 0.0
    %1431 = vmatpush1.msra.mxu0 0.0
    %1432 = vmatprep.subr.mxu0 0.0
    %1433 = vmatpush1.msra.mxu0 %v1376
    %1434 = vmatprep.subr.mxu0 0.0
    %1435 = vmatpush1.msra.mxu0 %v1375
    %1436 = vmatprep.subr.mxu0 0.0
    %1437 = vmatpush1.msra.mxu0 %v1374
    %1438 = vmatprep.subr.mxu0 0.0
    %1439 = vmatpush1.msra.mxu0 %v1373
    %1440 = vmatprep.subr.mxu0 0.0
    %1441 = vmatpush2.msra.mxu0 0.0
    %1442 = vmatprep.subr.mxu0 0.0
    %1443 = vmatpush2.msra.mxu0 0.0
    %1444 = vmatprep.subr.mxu0 0.0
    %1445 = vmatpush2.msra.mxu0 0.0
    %1446 = vmatprep.subr.mxu0 0.0
    %1447 = vmatpush2.msra.mxu0 0.0
    %1448 = vmatprep.subr.mxu0 0.0
    %1449 = vmatpush2.msra.mxu0 0.0
    %1450 = vmatprep.subr.mxu0 0.0
    %1451 = vmatpush2.msra.mxu0 0.0
    %1452 = vmatprep.subr.mxu0 0.0
    %1453 = vmatpush2.msra.mxu0 0.0
    %1454 = vmatprep.subr.mxu0 0.0
    %1455 = vmatpush2.msra.mxu0 0.0
    %1456 = vmatprep.subr.mxu0 0.0
    %1457 = vmatpush2.msra.mxu0 0.0
    %1458 = vmatprep.subr.mxu0 0.0
    %1459 = vmatpush2.msra.mxu0 0.0
    %1460 = vmatprep.subr.mxu0 0.0
    %1461 = vmatpush2.msra.mxu0 0.0
    %1462 = vmatprep.subr.mxu0 0.0
    %1463 = vmatpush2.msra.mxu0 0.0
    %1464 = vmatprep.subr.mxu0 0.0
    %1465 = vmatpush2.msra.mxu0 0.0
    %1466 = vmatprep.subr.mxu0 0.0
    %1467 = vmatpush2.msra.mxu0 0.0
    %1468 = vmatprep.subr.mxu0 0.0
    %1469 = vmatpush2.msra.mxu0 0.0
    %1470 = vmatprep.subr.mxu0 0.0
    %1471 = vmatpush2.msra.mxu0 0.0
    %1472 = vmatprep.mubr.f32.mxu0 0.0
    %1473 = vmatmul.mubr.f32.gmra.mxu0 %v1406
    %v1474 = vpop.f32.mrf.mxu0
    %v1475 = vadd.f32 %v1382, %v1474
    %v1476 = vpop.f32.mrf.mxu0
    %1477 = vdwg.mxu0
    %vm1478 = vcmask 64512
    %v1479 = vsel %vm1478, %v1475, -inf
    %1480 = vmax.xlane.f32.xlu0 %v1479
    %v1481 = vpop.xlane.xlu0 %1480
    %v1482 = vsub.f32 %v1475, %v1481
    %v1483 = vmul.f32 %v1482, 1.442695
    %v1484 = vpow.pop %v1483
    %v1485 = vsel %vm1478, %v1484, 0.0
    %1486 = vadd.xlane.f32.xlu0 %v1485
    %v1487 = vpop.xlane.xlu0 %1486
    %v1488 = vrcp.pop %v1487
    %v1489 = vmul.f32 %v1484, %v1488
    %1490 = vst.msk [vmem:[#allocation2] sm:$0xff] %vm1478, %v1489
    // Predicated region
    $region30: #{torch_model_forward.1} parent=1 // pred_check
      _
    $region31: #{torch_model_forward.1} parent=1 // pred_check_branch
      %1492 = sbr.rel (0) target = $region33
    $region32: #{torch_model_forward.1} parent=1 // pred_region
      %s1494 = ssub.s32 128, 128
      %1495 = vsyncadd [#allocation3], %s1494
      %s1497 = sshll.u32 [#allocation2], 4
      %s1498 = int_to_ptr.vmem [resolvable:$true] %s1497
      %1500 = dma.vmem_to_hbm [thread:$0]  %s1498, 128, %s7, [#allocation3]
    $region33: #{torch_model_forward.1} parent=1 // pred_fallthru
      _
    // Predicated region
    $region34: #{torch_model_forward.1} parent=1 // pred_check
      _
    $region35: #{torch_model_forward.1} parent=1 // pred_check_branch
      %1502 = sbr.rel (0) target = $region37
    $region36: #{torch_model_forward.1} parent=1 // pred_region
      %1503 = dma.done [#allocation3], 128
    $region37: #{torch_model_forward.1} parent=1 // pred_fallthru
      _
    %1504 = vsyncpa [#allocation3], 1

</llo_original>
